<compile_context>
chip_gen: v5e
topology: v5e:2x2
jax: 0.10.0
libtpu: 0.0.40
codegen_flags: <defaults>
</compile_context>

<pallas_src>
import functools
import math

import jax
import jax.numpy as jnp
from jax.experimental import pallas as pl
from jax.experimental.pallas import tpu as pltpu


def _clip_kernel(boxes_ref, out_ref, *, img_h, img_w):
    # Block: (Bb, 4, tr, 128) -- the 4 box channels sit on a leading, untiled
    # axis, so channel selection is a static slab slice, not a sublane shuffle.
    # Python-float constants are weakly typed, so compute stays in the input
    # dtype (bf16 stays bf16 on v6e/v7x; compiler widens as needed on v5e).
    odt = out_ref.dtype

    # x / w channels  (x clamps against img_w)
    x = boxes_ref[:, 0:1]
    w = boxes_ref[:, 2:3]
    hw = 0.5 * w
    tlx = jnp.maximum(x - hw, 0.0)
    brx = jnp.minimum(x + hw, img_w)
    out_ref[:, 0:1] = ((tlx + brx) * 0.5).astype(odt)
    out_ref[:, 2:3] = jnp.maximum(brx - tlx, 0.0).astype(odt)

    # y / h channels  (y clamps against img_h)
    y = boxes_ref[:, 1:2]
    h = boxes_ref[:, 3:4]
    hh = 0.5 * h
    tly = jnp.maximum(y - hh, 0.0)
    bry = jnp.minimum(y + hh, img_h)
    out_ref[:, 1:2] = ((tly + bry) * 0.5).astype(odt)
    out_ref[:, 3:4] = jnp.maximum(bry - tly, 0.0).astype(odt)


def _cdiv(a, b):
    return -(-a // b)


def _round_down_mult(x, m):
    return (x // m) * m


def _largest_divisor_leq(n, cap):
    cap = max(1, min(n, cap))
    for d in range(cap, 0, -1):
        if n % d == 0:
            return d
    return 1


def clip_box2d_to_image(boxes, image_size, *, block_bytes=2 * 1024 * 1024):
    """Pallas TPU implementation of ClipBox2DToImage.forward.

    boxes: (B, 4, *spatial) float array with channels [x, y, w, h].
    image_size: (img_h, img_w).  Returns an array of the same shape/dtype.
    """
    img_h, img_w = image_size
    assert boxes.ndim >= 2 and boxes.shape[1] == 4, "expected (B, 4, ...) boxes"

    B = boxes.shape[0]
    A = math.prod(boxes.shape[2:]) if boxes.ndim > 2 else 1
    dtype = boxes.dtype
    itemsize = jnp.dtype(dtype).itemsize

    LANES = 128
    R = max(1, _cdiv(A, LANES))        # 128-lane rows covering A anchors
    A_pad = R * LANES

    x = boxes.reshape(B, 4, A)
    if A_pad != A:
        # Pad only to the next lane multiple; skipped when A % 128 == 0.
        x = jnp.pad(x, ((0, 0), (0, 0), (0, A_pad - A)))
    x = x.reshape(B, 4, R, LANES)      # free reshape: trailing-dim split only

    # --- block sizing -------------------------------------------------------
    bytes_per_row = 4 * LANES * itemsize          # one (1,128) row x 4 channels
    rows_target = max(8, _round_down_mult(block_bytes // bytes_per_row, 8))

    if R <= rows_target:
        # All rows of one batch element fit in a block: use the full R
        # (full-extent dim, exempt from the multiple-of-8 rule) and pack batch
        # elements to amortize per-step pipeline overhead.
        tr = R
        ntiles = 1
        per_elem_bytes = 4 * R * LANES * itemsize
        Bb = _largest_divisor_leq(B, max(1, block_bytes // per_elem_bytes))
    else:
        # Tile the row axis with a multiple-of-8 block; a ragged last tile is
        # masked by Pallas (no wrapper-side padding to a tile multiple).
        tr = rows_target
        ntiles = _cdiv(R, tr)
        Bb = 1

    nb = _cdiv(B, Bb)

    # Guarantee >= 2 grid steps when splittable (v7x: 2 TCs share the grid).
    if nb * ntiles == 1:
        if B > 1:
            Bb = _largest_divisor_leq(B, max(1, B // 2))
            nb = _cdiv(B, Bb)
        elif R >= 16:
            tr = max(8, _round_down_mult(_cdiv(R, 2), 8))
            ntiles = _cdiv(R, tr)

    kernel = functools.partial(
        _clip_kernel, img_h=float(img_h), img_w=float(img_w)
    )
    spec = pl.BlockSpec((Bb, 4, tr, LANES), lambda b, j: (b, 0, j, 0))

    out = pl.pallas_call(
        kernel,
        out_shape=jax.ShapeDtypeStruct((B, 4, R, LANES), dtype),
        grid=(nb, ntiles),
        in_specs=[spec],
        out_specs=spec,
        compiler_params=pltpu.CompilerParams(
            dimension_semantics=("parallel", "parallel")
        ),
    )(x)

    out = out.reshape(B, 4, A_pad)
    if A_pad != A:
        out = out[:, :, :A]
    return out.reshape(boxes.shape)


def _reference(boxes, image_size):
    img_h, img_w = image_size
    pos = boxes[:, :2]
    size = boxes[:, 2:]
    tl = jnp.maximum(pos - size * 0.5, 0.0)
    br = pos + size * 0.5
    br = br.at[:, 0].set(jnp.minimum(br[:, 0], img_w))
    br = br.at[:, 1].set(jnp.minimum(br[:, 1], img_h))
    new_pos = (tl + br) * 0.5
    new_size = jnp.maximum(br - tl, 0.0)
    return jnp.concatenate([new_pos, new_size], axis=1)


if __name__ == "__main__":
    key = jax.random.PRNGKey(0)
    k1, k2 = jax.random.split(key)

    B, C, H, W = 2, 4, 16, 16          # (B, channels=[x,y,w,h], spatial 16x16)
    image_size = (32, 48)              # (img_h, img_w)

    pos = jax.random.uniform(k1, (B, 2, H, W), jnp.float32,
                             minval=-10.0, maxval=60.0)
    size = jax.random.uniform(k2, (B, 2, H, W), jnp.float32,
                              minval=0.0, maxval=40.0)
    boxes = jnp.concatenate([pos, size], axis=1)

    out = clip_box2d_to_image(boxes, image_size)
    out = jax.block_until_ready(out)

    ref = _reference(boxes, image_size)
    assert out.shape == boxes.shape == (B, C, H, W)
    assert jnp.allclose(out, ref, atol=1e-5, rtol=1e-5), "mismatch vs reference"

    print("KERNEL_OK")
</pallas_src>

<mosaic_0001>
module attributes {stable_mosaic.version = 11 : i64} {
  func.func @_clip_kernel(%arg0: i32, %arg1: i32, %arg2: memref<1x4x2x128xf32, #tpu.memory_space<vmem>>, %arg3: memref<1x4x2x128xf32, #tpu.memory_space<vmem>>) attributes {dimension_semantics = [#tpu.dimension_semantics<parallel>, #tpu.dimension_semantics<parallel>], iteration_bounds = array<i64: 2, 1>, scalar_prefetch = 0 : i64, scratch_operands = 0 : i64, tpu.core_type = #tpu.core_type<tc>, window_params = [{transform_indices = @transform_0, window_bounds = array<i64: 1, 4, 2, 128>}, {transform_indices = @transform_1, window_bounds = array<i64: 1, 4, 2, 128>}]} {
    %c0 = arith.constant 0 : index
    %c0_0 = arith.constant 0 : index
    %c0_1 = arith.constant 0 : index
    %c0_2 = arith.constant 0 : index
    %0 = vector.load %arg2[%c0, %c0_0, %c0_1, %c0_2] : memref<1x4x2x128xf32, #tpu.memory_space<vmem>>, vector<1x1x2x128xf32>
    %c0_3 = arith.constant 0 : index
    %c2 = arith.constant 2 : index
    %c0_4 = arith.constant 0 : index
    %c0_5 = arith.constant 0 : index
    %1 = vector.load %arg2[%c0_3, %c2, %c0_4, %c0_5] : memref<1x4x2x128xf32, #tpu.memory_space<vmem>>, vector<1x1x2x128xf32>
    %cst = arith.constant 5.000000e-01 : f32
    %2 = vector.broadcast %cst : f32 to vector<1x1x2x128xf32>
    %3 = arith.mulf %2, %1 : vector<1x1x2x128xf32>
    %4 = arith.subf %0, %3 : vector<1x1x2x128xf32>
    %cst_6 = arith.constant 0.000000e+00 : f32
    %5 = vector.broadcast %cst_6 : f32 to vector<1x1x2x128xf32>
    %6 = arith.maximumf %4, %5 : vector<1x1x2x128xf32>
    %7 = arith.addf %0, %3 : vector<1x1x2x128xf32>
    %cst_7 = arith.constant 4.800000e+01 : f32
    %8 = vector.broadcast %cst_7 : f32 to vector<1x1x2x128xf32>
    %9 = arith.minimumf %7, %8 : vector<1x1x2x128xf32>
    %10 = arith.addf %6, %9 : vector<1x1x2x128xf32>
    %cst_8 = arith.constant 5.000000e-01 : f32
    %11 = vector.broadcast %cst_8 : f32 to vector<1x1x2x128xf32>
    %12 = arith.mulf %10, %11 : vector<1x1x2x128xf32>
    %c0_9 = arith.constant 0 : index
    %c0_10 = arith.constant 0 : index
    %c0_11 = arith.constant 0 : index
    %c0_12 = arith.constant 0 : index
    %13 = vector.load %arg3[%c0_9, %c0_10, %c0_11, %c0_12] : memref<1x4x2x128xf32, #tpu.memory_space<vmem>>, vector<1x1x2x128xf32>
    tpu.vector_store %arg3[%c0_9, %c0_10, %c0_11, %c0_12], %12 {strides = array<i32>} : memref<1x4x2x128xf32, #tpu.memory_space<vmem>>, vector<1x1x2x128xf32>,
    %14 = arith.subf %9, %6 : vector<1x1x2x128xf32>
    %cst_13 = arith.constant 0.000000e+00 : f32
    %15 = vector.broadcast %cst_13 : f32 to vector<1x1x2x128xf32>
    %16 = arith.maximumf %14, %15 : vector<1x1x2x128xf32>
    %c0_14 = arith.constant 0 : index
    %c2_15 = arith.constant 2 : index
    %c0_16 = arith.constant 0 : index
    %c0_17 = arith.constant 0 : index
    %17 = vector.load %arg3[%c0_14, %c2_15, %c0_16, %c0_17] : memref<1x4x2x128xf32, #tpu.memory_space<vmem>>, vector<1x1x2x128xf32>
    tpu.vector_store %arg3[%c0_14, %c2_15, %c0_16, %c0_17], %16 {strides = array<i32>} : memref<1x4x2x128xf32, #tpu.memory_space<vmem>>, vector<1x1x2x128xf32>,
    %c0_18 = arith.constant 0 : index
    %c1 = arith.constant 1 : index
    %c0_19 = arith.constant 0 : index
    %c0_20 = arith.constant 0 : index
    %18 = vector.load %arg2[%c0_18, %c1, %c0_19, %c0_20] : memref<1x4x2x128xf32, #tpu.memory_space<vmem>>, vector<1x1x2x128xf32>
    %c0_21 = arith.constant 0 : index
    %c3 = arith.constant 3 : index
    %c0_22 = arith.constant 0 : index
    %c0_23 = arith.constant 0 : index
    %19 = vector.load %arg2[%c0_21, %c3, %c0_22, %c0_23] : memref<1x4x2x128xf32, #tpu.memory_space<vmem>>, vector<1x1x2x128xf32>
    %cst_24 = arith.constant 5.000000e-01 : f32
    %20 = vector.broadcast %cst_24 : f32 to vector<1x1x2x128xf32>
    %21 = arith.mulf %20, %19 : vector<1x1x2x128xf32>
    %22 = arith.subf %18, %21 : vector<1x1x2x128xf32>
    %cst_25 = arith.constant 0.000000e+00 : f32
    %23 = vector.broadcast %cst_25 : f32 to vector<1x1x2x128xf32>
    %24 = arith.maximumf %22, %23 : vector<1x1x2x128xf32>
    %25 = arith.addf %18, %21 : vector<1x1x2x128xf32>
    %cst_26 = arith.constant 3.200000e+01 : f32
    %26 = vector.broadcast %cst_26 : f32 to vector<1x1x2x128xf32>
    %27 = arith.minimumf %25, %26 : vector<1x1x2x128xf32>
    %28 = arith.addf %24, %27 : vector<1x1x2x128xf32>
    %cst_27 = arith.constant 5.000000e-01 : f32
    %29 = vector.broadcast %cst_27 : f32 to vector<1x1x2x128xf32>
    %30 = arith.mulf %28, %29 : vector<1x1x2x128xf32>
    %c0_28 = arith.constant 0 : index
    %c1_29 = arith.constant 1 : index
    %c0_30 = arith.constant 0 : index
    %c0_31 = arith.constant 0 : index
    %31 = vector.load %arg3[%c0_28, %c1_29, %c0_30, %c0_31] : memref<1x4x2x128xf32, #tpu.memory_space<vmem>>, vector<1x1x2x128xf32>
    tpu.vector_store %arg3[%c0_28, %c1_29, %c0_30, %c0_31], %30 {strides = array<i32>} : memref<1x4x2x128xf32, #tpu.memory_space<vmem>>, vector<1x1x2x128xf32>,
    %32 = arith.subf %27, %24 : vector<1x1x2x128xf32>
    %cst_32 = arith.constant 0.000000e+00 : f32
    %33 = vector.broadcast %cst_32 : f32 to vector<1x1x2x128xf32>
    %34 = arith.maximumf %32, %33 : vector<1x1x2x128xf32>
    %c0_33 = arith.constant 0 : index
    %c3_34 = arith.constant 3 : index
    %c0_35 = arith.constant 0 : index
    %c0_36 = arith.constant 0 : index
    %35 = vector.load %arg3[%c0_33, %c3_34, %c0_35, %c0_36] : memref<1x4x2x128xf32, #tpu.memory_space<vmem>>, vector<1x1x2x128xf32>
    tpu.vector_store %arg3[%c0_33, %c3_34, %c0_35, %c0_36], %34 {strides = array<i32>} : memref<1x4x2x128xf32, #tpu.memory_space<vmem>>, vector<1x1x2x128xf32>,
    return
  }
  func.func @transform_0(%arg0: i32, %arg1: i32) -> (i32, i32, i32, i32) {
    %c0_i32 = arith.constant 0 : i32
    %c0_i32_0 = arith.constant 0 : i32
    %c0_i32_1 = arith.constant 0 : i32
    return %arg0, %c0_i32, %arg1, %c0_i32_0 : i32, i32, i32, i32
  }
  func.func @transform_1(%arg0: i32, %arg1: i32) -> (i32, i32, i32, i32) {
    %c0_i32 = arith.constant 0 : i32
    %c0_i32_0 = arith.constant 0 : i32
    %c0_i32_1 = arith.constant 0 : i32
    return %arg0, %c0_i32, %arg1, %c0_i32_0 : i32, i32, i32, i32
  }
}

</mosaic_0001>

<llo_original>
// kernel: tpu_custom_call.1
$region0: #{tpu_custom_call.1}
  #allocation0 [shape = 'u32[]', space=smem, size = 0x4, offset = 0x4, fixed_abs, tag = 'smem constant byte address 0x4 - core index']
  #allocation1 [shape = 'u32[72,128]{1,0:T(1,128)}', space=vmem, size = 0x9000, scoped, tag = 'internal scratch']
  %s0 = inlined_call_operand.hbm [shape: f32[2,4,2,128], index: 0, kind: input, shape index: {}]
  %s1 = inlined_call_operand.hbm [shape: f32[2,4,2,128], index: 1, kind: output, shape index: {}]
  %s2 = sld [smem:[#allocation0]]
  $region41: #{tpu_custom_call.1} parent=0
    _
  %s4 = ssub.s32 1, %s2
  %s5 = scalar_select 0, %s4, %s2
  $region1: #{tpu_custom_call.1} parent=0
    #allocation2 [shape = 'u8[8192]{0}', space=vmem, size = 0x2000, scoped, tag = 'input window, operand 0']
    #allocation3 [shape = 's32[2]{0}', space=sflag, size = 0x8, scoped, tag = 'scoped memory for tpu_custom_call.1']
    #allocation4 [shape = 's32[2]{0}', space=sflag, size = 0x8, scoped, tag = 'scoped memory for tpu_custom_call.1']
    #allocation5 [shape = 'u8[8192]{0}', space=vmem, size = 0x2000, scoped, tag = 'output window, operand 0']
    %6 = vsyncpa [#allocation3], 0
    %s7 = scalar_lea.sflag [#allocation3], 1
    %8 = vsyncpa %s7, 0
    %9 = vsyncpa [#allocation4], 0
    %s10 = scalar_lea.sflag [#allocation4], 1
    %11 = vsyncpa %s10, 0
    loop: start=0, step=1, limit=4
    $region2: #{tpu_custom_call.1} parent=1 // loop_pre_header
      _
    $region3: #{tpu_custom_call.1} parent=1 // loop_header
      %s13 = sphi 0, %s17
      %p14 = scmp.ge.s32.totalorder %s13, 4
      %s20 = sphi 0, %s32
      %s21 = sphi 0, %s28
      %s22 = sphi 0, %s20
      %s23 = sphi 0, %s21
      %s24 = sphi 0, %s22
      %s25 = sphi 0, %s23
      %s37 = sphi 0, %s39
      %s40 = sphi 0, %s37
      %s41 = sphi 0, %s40
      %s57 = sphi 0, %s41
      %s65 = sphi 0, %s67
      %s68 = sphi 0, %s65
      %s69 = sphi 0, %s68
      %s85 = sphi 0, %s69
    $region4: #{tpu_custom_call.1} parent=1 // loop_header_branch
      %16 = sbr.rel (%p14) target = $region8
    $region5: #{tpu_custom_call.1} parent=1 // loop_body
      %s18 = ssub.s32 %s13, 1
      %s19 = ssub.s32 %s13, 2
      %s26 = sadd.s32 1, %s21
      %p27 = scmp.ge.s32.totalorder %s26, 1
      %s28 = scalar_select %p27, 0, %s26
      %s29 = sadd.s32 1, %s20
      %s30 = scalar_select %p27, %s29, %s20
      %p31 = scmp.ge.s32.totalorder %s30, 2
      %s32 = scalar_select %p31, 0, %s30
      %s33 = ssub.s32 %s20, %s32
      %s34 = ssub.s32 %s21, %s28
      %s35 = sor.u32 %s33, %s34
      %p36 = scmp.eq.s32.totalorder %s35, 0
      %s38 = sadd.s32 %s37, 1
      %s39 = scalar_select %p36, %s37, %s38
      %p42 = pneg %p36
      %p43 = scmp.eq.s32.totalorder %s13, 1
      %p44 = por %p42, %p43
      %p45 = scmp.ne.s32.totalorder %s37, %s40
      %p46 = scmp.eq.s32.totalorder %s13, 0
      %p47 = por %p45, %p46
      %p48 = scmp.ne.s32.totalorder %s37, %s40
      %p49 = scmp.eq.s32.totalorder %s18, 1
      %p50 = por %p48, %p49
      %p51 = scmp.ne.s32.totalorder %s40, %s41
      %p52 = scmp.eq.s32.totalorder %s18, 0
      %p53 = por %p51, %p52
      %p54 = scmp.ne.s32.totalorder %s40, %s41
      %p55 = scmp.eq.s32.totalorder %s19, 1
      %p56 = por %p54, %p55
      %p58 = scmp.ne.s32.totalorder %s41, %s57
      %p59 = scmp.eq.s32.totalorder %s19, 0
      %p60 = por %p58, %p59
      %s61 = ssub.s32 %s20, %s32
      %s62 = ssub.s32 %s21, %s28
      %s63 = sor.u32 %s61, %s62
      %p64 = scmp.eq.s32.totalorder %s63, 0
      %s66 = sadd.s32 %s65, 1
      %s67 = scalar_select %p64, %s65, %s66
      %p70 = pneg %p64
      %p71 = scmp.eq.s32.totalorder %s13, 1
      %p72 = por %p70, %p71
      %p73 = scmp.ne.s32.totalorder %s65, %s68
      %p74 = scmp.eq.s32.totalorder %s13, 0
      %p75 = por %p73, %p74
      %p76 = scmp.ne.s32.totalorder %s65, %s68
      %p77 = scmp.eq.s32.totalorder %s18, 1
      %p78 = por %p76, %p77
      %p79 = scmp.ne.s32.totalorder %s68, %s69
      %p80 = scmp.eq.s32.totalorder %s18, 0
      %p81 = por %p79, %p80
      %p82 = scmp.ne.s32.totalorder %s68, %s69
      %p83 = scmp.eq.s32.totalorder %s19, 1
      %p84 = por %p82, %p83
      %p86 = scmp.ne.s32.totalorder %s69, %s85
      %p87 = scmp.eq.s32.totalorder %s19, 0
      %p88 = por %p86, %p87
      %p89 = scmp.le.s32.totalorder 1, %s13
      %p90 = scmp.lt.s32.totalorder %s13, 3
      %p91 = pnand %p89, %p90
      %p92 = pneg %p91
      // Predicated region
      $region9: #{tpu_custom_call.1} parent=5 // pred_check
        _
      $region10: #{tpu_custom_call.1} parent=5 // pred_check_branch
        %94 = sbr.rel (%p91) target = $region12
      $region11: #{tpu_custom_call.1} parent=5 // pred_region
        %s95 = ssub.s32 %s13, 1
      $region12: #{tpu_custom_call.1} parent=5 // pred_fallthru
        _
      %p96 = scmp.lt.s32.totalorder %s13, 2
      // Predicated region
      $region13: #{tpu_custom_call.1} parent=5 // pred_check
        %p97 = pneg %p96
      $region14: #{tpu_custom_call.1} parent=5 // pred_check_branch
        %99 = sbr.rel (%p97) target = $region16
      $region15: #{tpu_custom_call.1} parent=5 // pred_region
        // Predicated region
        $region17: #{tpu_custom_call.1} parent=15 // pred_check
          %p100 = pneg %p47
        $region18: #{tpu_custom_call.1} parent=15 // pred_check_branch
          %102 = sbr.rel (%p100) target = $region20
        $region19: #{tpu_custom_call.1} parent=15 // pred_region
          %s103 = sand.u32 %s37, 1
          %s104 = scalar_lea.sflag [#allocation3], %s103
          %s105 = sand.u32 %s37, 1
          %s106 = smul.addr %s105, 8
          %s107 = scalar_lea.vmem [#allocation2], %s106
          %109 = vsyncadd %s104, 0
          %s110 = smul.addr %s20, 4
          %s111 = sadd.s32 %s21, %s110
          %s112 = smul.addr %s111, 2
          %s113 = scalar_lea.hbm %s0, %s112
          %s114 = sshll.u32 %s113, 4
          %s115 = int_to_ptr.hbm [resolvable:$true] %s114
          %s116 = sshll.u32 %s107, 4
          %s117 = int_to_ptr.vmem [resolvable:$true] %s116
          %122 = dma.hbm_to_vmem [thread:$0]  %s115, 128, %s117, %s104, 32, 32, 2
        $region20: #{tpu_custom_call.1} parent=15 // pred_fallthru
          _
      $region16: #{tpu_custom_call.1} parent=5 // pred_fallthru
        _
      %p123 = scmp.le.s32.totalorder 1, %s13
      %p124 = scmp.lt.s32.totalorder %s13, 3
      %p125 = pnand %p123, %p124
      %p126 = pneg %p125
      // Predicated region
      $region21: #{tpu_custom_call.1} parent=5 // pred_check
        _
      $region22: #{tpu_custom_call.1} parent=5 // pred_check_branch
        %128 = sbr.rel (%p125) target = $region24
      $region23: #{tpu_custom_call.1} parent=5 // pred_region
        %s129 = ssub.s32 %s13, 1
        %s130 = sand.u32 %s40, 1
        %s131 = scalar_lea.sflag [#allocation3], %s130
        %s132 = sand.u32 %s40, 1
        %s133 = smul.addr %s132, 8
        %s134 = scalar_lea.vmem [#allocation2], %s133
        // Predicated region
        $region25: #{tpu_custom_call.1} parent=23 // pred_check
          %p135 = pneg %p53
        $region26: #{tpu_custom_call.1} parent=23 // pred_check_branch
          %137 = sbr.rel (%p135) target = $region28
        $region27: #{tpu_custom_call.1} parent=23 // pred_region
          %139 = dma.done %s131, 128
        $region28: #{tpu_custom_call.1} parent=23 // pred_fallthru
          _
        %s140 = sand.u32 %s40, 1
        %s141 = scalar_lea.sflag [#allocation3], %s140
        %s142 = sand.u32 %s40, 1
        %s143 = smul.addr %s142, 8
        %s144 = scalar_lea.vmem [#allocation2], %s143
        %p145 = pneg %p53
        %p146 = pneg %p50
        %p147 = pneg %p81
        %p148 = pneg %p78
        %s149 = sand.u32 %s68, 1
        %s150 = scalar_lea.sflag [#allocation4], %s149
        %s151 = sand.u32 %s68, 1
        %s152 = smul.addr %s151, 8
        %s153 = scalar_lea.vmem [#allocation5], %s152
        %v154 = vld [vmem:[%s134] sm:$0x3]
        %s155 = scalar_lea.vmem %s134, 4 [#allocation2]
        %v156 = vld [vmem:[%s155] sm:$0x3]
        %v157 = vmul.f32 %v156, 0.5
        %v158 = vsub.f32 %v154, %v157
        %v159 = vmax.f32 %v158, 0.0
        %v160 = vadd.f32 %v154, %v157
        %v161 = vmin.f32 %v160, 48.0
        %v162 = vadd.f32 %v159, %v161
        %v163 = vmul.f32 %v162, 0.5
        %164 = vst [vmem:[%s153] sm:$0x3] %v163
        %v165 = vsub.f32 %v161, %v159
        %v166 = vmax.f32 %v165, 0.0
        %s167 = scalar_lea.vmem %s153, 4 [#allocation5]
        %168 = vst [vmem:[%s167] sm:$0x3] %v166
        %s169 = scalar_lea.vmem %s134, 2 [#allocation2]
        %v170 = vld [vmem:[%s169] sm:$0x3]
        %s171 = scalar_lea.vmem %s134, 6 [#allocation2]
        %v172 = vld [vmem:[%s171] sm:$0x3]
        %v173 = vmul.f32 %v172, 0.5
        %v174 = vsub.f32 %v170, %v173
        %v175 = vmax.f32 %v174, 0.0
        %v176 = vadd.f32 %v170, %v173
        %v177 = vmin.f32 %v176, 32.0
        %v178 = vadd.f32 %v175, %v177
        %v179 = vmul.f32 %v178, 0.5
        %s180 = scalar_lea.vmem %s153, 2 [#allocation5]
        %181 = vst [vmem:[%s180] sm:$0x3] %v179
        %v182 = vsub.f32 %v177, %v175
        %v183 = vmax.f32 %v182, 0.0
        %s184 = scalar_lea.vmem %s153, 6 [#allocation5]
        %185 = vst [vmem:[%s184] sm:$0x3] %v183
        %s186 = sand.u32 %s68, 1
        %s187 = scalar_lea.sflag [#allocation4], %s186
        %s188 = sand.u32 %s68, 1
        %s189 = smul.addr %s188, 8
        %s190 = scalar_lea.vmem [#allocation5], %s189
        // Predicated region
        $region29: #{tpu_custom_call.1} parent=23 // pred_check
          %p191 = pneg %p78
        $region30: #{tpu_custom_call.1} parent=23 // pred_check_branch
          %193 = sbr.rel (%p191) target = $region32
        $region31: #{tpu_custom_call.1} parent=23 // pred_region
          %195 = vsyncadd %s187, 0
          %s196 = smul.addr %s22, 4
          %s197 = sadd.s32 %s23, %s196
          %s198 = smul.addr %s197, 2
          %s199 = scalar_lea.hbm %s1, %s198
          %s200 = sshll.u32 %s190, 4
          %s201 = int_to_ptr.vmem [resolvable:$true] %s200
          %s202 = sshll.u32 %s199, 4
          %s203 = int_to_ptr.hbm [resolvable:$true] %s202
          %208 = dma.vmem_to_hbm [thread:$0]  %s201, 128, %s203, %s187, 32, 32, 2
        $region32: #{tpu_custom_call.1} parent=23 // pred_fallthru
          _
      $region24: #{tpu_custom_call.1} parent=5 // pred_fallthru
        _
      %p209 = scmp.le.s32.totalorder 2, %s13
      // Predicated region
      $region33: #{tpu_custom_call.1} parent=5 // pred_check
        %p210 = pneg %p209
      $region34: #{tpu_custom_call.1} parent=5 // pred_check_branch
        %212 = sbr.rel (%p210) target = $region36
      $region35: #{tpu_custom_call.1} parent=5 // pred_region
        %s213 = ssub.s32 %s13, 2
        // Predicated region
        $region37: #{tpu_custom_call.1} parent=35 // pred_check
          %p214 = pneg %p84
        $region38: #{tpu_custom_call.1} parent=35 // pred_check_branch
          %216 = sbr.rel (%p214) target = $region40
        $region39: #{tpu_custom_call.1} parent=35 // pred_region
          %s217 = sand.u32 %s69, 1
          %s218 = scalar_lea.sflag [#allocation4], %s217
          %s219 = sand.u32 %s69, 1
          %s220 = smul.addr %s219, 8
          %s221 = scalar_lea.vmem [#allocation5], %s220
          %223 = dma.done %s218, 128
        $region40: #{tpu_custom_call.1} parent=35 // pred_fallthru
          _
      $region36: #{tpu_custom_call.1} parent=5 // pred_fallthru
        _
    $region6: #{tpu_custom_call.1} parent=1 // loop_footer
      %s17 = sadd.s32 1, %s13
    $region7: #{tpu_custom_call.1} parent=1 // loop_footer_branch
      %12 = sbr.rel target = $region3
    $region8: #{tpu_custom_call.1} parent=1 // loop_exit
      _
    %224 = vsyncpa [#allocation3], 1
    %s225 = scalar_lea.sflag [#allocation3], 1
    %226 = vsyncpa %s225, 1
    %227 = vsyncpa [#allocation4], 1
    %s228 = scalar_lea.sflag [#allocation4], 1
    %229 = vsyncpa %s228, 1

</llo_original>
